<compile_context>
chip_gen: v6e
topology: v6e:2x2x1
jax: 0.10.0
libtpu: 0.0.40
codegen_flags: <defaults>
</compile_context>

<pallas_src>
import jax
import jax.numpy as jnp
from jax.experimental import pallas as pl
from jax.experimental.pallas import tpu as pltpu


# Tile of the (lane-dense) sample axis: 1024*128 f32 elements per row.
#   x tile (2, TILE_N)  -> 1   MiB raw (4 MiB after 8-sublane padding in VMEM)
#   o tile (1, TILE_N)  -> 0.5 MiB raw (4 MiB padded)
# Double-buffered total ~16 MiB: fits the default scoped-VMEM budget on v5e/v6e/v7x.
_TILE_N = 1024 * 128


def _linreg_kernel(w_ref, b_ref, x_ref, o_ref):
    """y[0, n] = sum_f w[0, f] * x[f, n] + b  — pure VPU, no MXU.

    w_ref (1, F) and b_ref (1, 1) are SMEM scalars; x_ref is a lane-dense
    (F, TILE_N) VMEM tile and o_ref a lane-dense (1, TILE_N) tile.
    """
    num_features = x_ref.shape[0]                 # static (= 2 for this module)
    acc = x_ref[0:1, :] * w_ref[0, 0]
    for f in range(1, num_features):              # static unrolled: one extra VPU FMA
        acc = acc + x_ref[f:f + 1, :] * w_ref[0, f]
    o_ref[...] = acc + b_ref[0, 0]


def linear_regression(x, w, b, *, tile_n=_TILE_N):
    """Pallas equivalent of the PyTorch forward: x @ w.t() + b.

    x: (N, F) f32, w: (1, F) f32, b: (1, 1) f32  ->  (N, 1) f32.
    """
    n, f = x.shape
    assert w.shape == (1, f) and b.shape == (1, 1)

    # Wrapper-side layout plumbing: feature-major, lane-dense sample axis.
    xt = jnp.asarray(x, jnp.float32).T                       # (F, N)

    # Tile / pad the sample axis to a multiple of 128 lanes.
    tile = min(tile_n, pl.cdiv(n, 128) * 128)
    num_tiles = pl.cdiv(n, tile)
    n_pad = num_tiles * tile
    if n_pad != n:
        xt = jnp.pad(xt, ((0, 0), (0, n_pad - n)))

    out = pl.pallas_call(
        _linreg_kernel,
        out_shape=jax.ShapeDtypeStruct((1, n_pad), jnp.float32),
        grid=(num_tiles,),
        in_specs=[
            # 2 + 1 scalars: keep them in SMEM, read on the scalar path.
            pl.BlockSpec(memory_space=pltpu.MemorySpace.SMEM),   # w (1, F)
            pl.BlockSpec(memory_space=pltpu.MemorySpace.SMEM),   # b (1, 1)
            # Feature-major input: full feature dim, lane-dense sample tile.
            pl.BlockSpec((f, tile), lambda i: (0, i)),
        ],
        out_specs=pl.BlockSpec((1, tile), lambda i: (0, i)),
        compiler_params=pltpu.CompilerParams(
            # Tiles are independent: shard across the two TensorCores on v7x;
            # harmless on single-TC v5e/v6e.
            dimension_semantics=("parallel",),
        ),
        cost_estimate=pl.CostEstimate(
            flops=2 * f * n,                    # F muls + F adds per sample
            transcendentals=0,
            bytes_accessed=(f + 1) * 4 * n,     # read F f32 features, write 1 f32
        ),
    )(jnp.asarray(w, jnp.float32), jnp.asarray(b, jnp.float32), xt)

    return out[:, :n].T                                      # back to (N, 1)


if __name__ == "__main__":
    key = jax.random.PRNGKey(0)
    k_w, k_x, k_x2 = jax.random.split(key, 3)

    # Parameters matching the PyTorch __init__:
    #   self.w = nn.Parameter(torch.randn_like(w0))  -> shape (1, 2), random normal
    #   self.b = nn.Parameter(torch.zeros_like(b0))  -> shape (1, 1), zeros
    w = jax.random.normal(k_w, (1, 2), dtype=jnp.float32)
    b = jnp.zeros((1, 1), dtype=jnp.float32)

    # Small batch of 8 samples with 2 features (consistent with w0 = [[2, -3]]).
    x = jax.random.normal(k_x, (8, 2), dtype=jnp.float32)

    out = jax.block_until_ready(linear_regression(x, w, b))
    ref = x @ w.T + b
    assert out.shape == (8, 1)
    assert jnp.allclose(out, ref, atol=1e-5), "mismatch vs reference (N=8)"

    # Also exercise the padding / tiling path with a non-multiple-of-128 batch.
    x2 = jax.random.normal(k_x2, (300, 2), dtype=jnp.float32)
    out2 = jax.block_until_ready(linear_regression(x2, w, b))
    ref2 = x2 @ w.T + b
    assert out2.shape == (300, 1)
    assert jnp.allclose(out2, ref2, atol=1e-5), "mismatch vs reference (N=300)"

    print("KERNEL_OK")
</pallas_src>

<mosaic_0001>
module attributes {stable_mosaic.version = 11 : i64} {
  func.func @_linreg_kernel(%arg0: i32, %arg1: memref<1x2xf32, #tpu.memory_space<smem>>, %arg2: memref<1x1xf32, #tpu.memory_space<smem>>, %arg3: memref<2x128xf32, #tpu.memory_space<vmem>>, %arg4: memref<1x128xf32, #tpu.memory_space<vmem>>) attributes {dimension_semantics = [#tpu.dimension_semantics<parallel>], iteration_bounds = array<i64: 1>, scalar_prefetch = 0 : i64, scratch_operands = 0 : i64, tpu.core_type = #tpu.core_type<tc>, window_params = [{transform_indices = @transform_0, window_bounds = array<i64: 1, 2>}, {transform_indices = @transform_1, window_bounds = array<i64: 1, 1>}, {transform_indices = @transform_2, window_bounds = array<i64: 2, 128>}, {transform_indices = @transform_3, window_bounds = array<i64: 1, 128>}]} {
    %c0 = arith.constant 0 : index
    %c0_0 = arith.constant 0 : index
    %0 = vector.load %arg3[%c0, %c0_0] : memref<2x128xf32, #tpu.memory_space<vmem>>, vector<1x128xf32>
    %c0_1 = arith.constant 0 : index
    %c0_2 = arith.constant 0 : index
    %1 = memref.load %arg1[%c0_1, %c0_2] : memref<1x2xf32, #tpu.memory_space<smem>>
    %2 = vector.broadcast %1 : f32 to vector<1x128xf32>
    %3 = arith.mulf %0, %2 : vector<1x128xf32>
    %c1 = arith.constant 1 : index
    %c0_3 = arith.constant 0 : index
    %4 = vector.load %arg3[%c1, %c0_3] : memref<2x128xf32, #tpu.memory_space<vmem>>, vector<1x128xf32>
    %c0_4 = arith.constant 0 : index
    %c1_5 = arith.constant 1 : index
    %5 = memref.load %arg1[%c0_4, %c1_5] : memref<1x2xf32, #tpu.memory_space<smem>>
    %6 = vector.broadcast %5 : f32 to vector<1x128xf32>
    %7 = arith.mulf %4, %6 : vector<1x128xf32>
    %8 = arith.addf %3, %7 : vector<1x128xf32>
    %c0_6 = arith.constant 0 : index
    %c0_7 = arith.constant 0 : index
    %9 = memref.load %arg2[%c0_6, %c0_7] : memref<1x1xf32, #tpu.memory_space<smem>>
    %10 = vector.broadcast %9 : f32 to vector<1x128xf32>
    %11 = arith.addf %8, %10 : vector<1x128xf32>
    %c0_8 = arith.constant 0 : index
    %c0_9 = arith.constant 0 : index
    %12 = vector.load %arg4[%c0_8, %c0_9] : memref<1x128xf32, #tpu.memory_space<vmem>>, vector<1x128xf32>
    tpu.vector_store %arg4[%c0_8, %c0_9], %11 {strides = array<i32>} : memref<1x128xf32, #tpu.memory_space<vmem>>, vector<1x128xf32>,
    return
  }
  func.func @transform_0(%arg0: i32) -> (i32, i32) {
    %c0_i32 = arith.constant 0 : i32
    %c0_i32_0 = arith.constant 0 : i32
    %c0_i32_1 = arith.constant 0 : i32
    return %c0_i32, %c0_i32_0 : i32, i32
  }
  func.func @transform_1(%arg0: i32) -> (i32, i32) {
    %c0_i32 = arith.constant 0 : i32
    %c0_i32_0 = arith.constant 0 : i32
    %c0_i32_1 = arith.constant 0 : i32
    return %c0_i32, %c0_i32_0 : i32, i32
  }
  func.func @transform_2(%arg0: i32) -> (i32, i32) {
    %c0_i32 = arith.constant 0 : i32
    %c0_i32_0 = arith.constant 0 : i32
    return %c0_i32, %arg0 : i32, i32
  }
  func.func @transform_3(%arg0: i32) -> (i32, i32) {
    %c0_i32 = arith.constant 0 : i32
    %c0_i32_0 = arith.constant 0 : i32
    return %c0_i32, %arg0 : i32, i32
  }
}

</mosaic_0001>

<llo_original>
// kernel: tpu_custom_call.1
$region0: #{tpu_custom_call.1}
  #allocation0 [shape = 'u32[]', space=smem, size = 0x4, offset = 0x4, fixed_abs, tag = 'smem constant byte address 0x4 - core index']
  #allocation1 [shape = 'u32[144,128]{1,0:T(1,128)}', space=vmem, size = 0x12000, scoped, tag = 'internal scratch']
  #allocation2 [shape = 'f32[1,1]{1,0:T(1,128)S(6)}', space=smem, size = 0x200, scoped, tag = 'scoped memory for tpu_custom_call.1']
  %s0 = inlined_call_operand.vmem [shape: f32[1,2], index: 0, kind: input, shape index: {}]
  %s1 = inlined_call_operand.<no memory space> [shape: f32[1,1], index: 1, kind: input, shape index: {}]
  %s2 = inlined_call_operand.vmem [shape: f32[2,128], index: 2, kind: input, shape index: {}]
  %s3 = inlined_call_operand.hbm [shape: f32[1,128], index: 3, kind: output, shape index: {}]
  %s4 = sld [smem:[#allocation0]]
  $region26: #{tpu_custom_call.1} parent=0
    _
  %s6 = ssub.s32 1, %s4
  %s7 = scalar_select 0, %s6, %s4
  %8 = sst [smem:[#allocation2]] %s1
  $region1: #{tpu_custom_call.1} parent=0
    #allocation3 [shape = 'u8[512]{0}', space=smem, size = 0x200, scoped, tag = 'input window, operand 0, single buffered']
    #allocation4 [shape = 's32[1]{0}', space=sflag, size = 0x4, scoped, tag = 'scoped memory for tpu_custom_call.1']
    #allocation5 [shape = 's32[1]{0}', space=sflag, size = 0x4, scoped, tag = 'scoped memory for tpu_custom_call.1']
    #allocation6 [shape = 'u8[512]{0}', space=vmem, size = 0x400, scoped, tag = 'output window, operand 0, single buffered']
    %9 = vsyncpa [#allocation5], 0
    %10 = vsyncpa [#allocation4], 0
    // Predicated region
    $region2: #{tpu_custom_call.1} parent=1 // pred_check
      _
    $region3: #{tpu_custom_call.1} parent=1 // pred_check_branch
      %12 = sbr.rel (0) target = $region5
    $region4: #{tpu_custom_call.1} parent=1 // pred_region
      %s14 = ssub.s32 16, 16
      %15 = vsyncadd [#allocation5], %s14
      %s17 = sshll.u32 %s0, 4
      %s18 = int_to_ptr.vmem [resolvable:$true] %s17
      %20 = dma.vmem_to_smem %s18, 16, [#allocation3], [#allocation5]
    $region5: #{tpu_custom_call.1} parent=1 // pred_fallthru
      _
    // Predicated region
    $region6: #{tpu_custom_call.1} parent=1 // pred_check
      _
    $region7: #{tpu_custom_call.1} parent=1 // pred_check_branch
      %22 = sbr.rel (0) target = $region9
    $region8: #{tpu_custom_call.1} parent=1 // pred_region
      _
    $region9: #{tpu_custom_call.1} parent=1 // pred_fallthru
      _
    // Predicated region
    $region10: #{tpu_custom_call.1} parent=1 // pred_check
      _
    $region11: #{tpu_custom_call.1} parent=1 // pred_check_branch
      %24 = sbr.rel (0) target = $region13
    $region12: #{tpu_custom_call.1} parent=1 // pred_region
      _
    $region13: #{tpu_custom_call.1} parent=1 // pred_fallthru
      _
    // Predicated region
    $region14: #{tpu_custom_call.1} parent=1 // pred_check
      _
    $region15: #{tpu_custom_call.1} parent=1 // pred_check_branch
      %26 = sbr.rel (0) target = $region17
    $region16: #{tpu_custom_call.1} parent=1 // pred_region
      %27 = dma.done [#allocation5], 16
    $region17: #{tpu_custom_call.1} parent=1 // pred_fallthru
      _
    %28 = sfence
    %v29 = vld [vmem:[%s2] sm:$0x1]
    %s30 = sld [smem:[#allocation3]]
    %v31 = vstv %s30
    %v32 = vmul.f32 %v29, %v31
    %v33 = vld [vmem:[%s2 + $0x1] sm:$0x1]
    %s34 = sld [smem:[#allocation3 + $0x1]]
    %v35 = vstv %s34
    %v36 = vmul.f32 %v33, %v35
    %v37 = vadd.f32 %v32, %v36
    %s38 = sld [smem:[#allocation2]]
    %v39 = vstv %s38
    %v40 = vadd.f32 %v37, %v39
    %41 = vst [vmem:[#allocation6] sm:$0x1] %v40
    // Predicated region
    $region18: #{tpu_custom_call.1} parent=1 // pred_check
      _
    $region19: #{tpu_custom_call.1} parent=1 // pred_check_branch
      %43 = sbr.rel (0) target = $region21
    $region20: #{tpu_custom_call.1} parent=1 // pred_region
      %s45 = ssub.s32 16, 16
      %46 = vsyncadd [#allocation4], %s45
      %s48 = sshll.u32 [#allocation6], 4
      %s49 = int_to_ptr.vmem [resolvable:$true] %s48
      %51 = dma.vmem_to_hbm [thread:$0]  %s49, 16, %s3, [#allocation4]
    $region21: #{tpu_custom_call.1} parent=1 // pred_fallthru
      _
    // Predicated region
    $region22: #{tpu_custom_call.1} parent=1 // pred_check
      _
    $region23: #{tpu_custom_call.1} parent=1 // pred_check_branch
      %53 = sbr.rel (0) target = $region25
    $region24: #{tpu_custom_call.1} parent=1 // pred_region
      %54 = dma.done [#allocation4], 16
    $region25: #{tpu_custom_call.1} parent=1 // pred_fallthru
      _
    %55 = vsyncpa [#allocation4], 1
    %56 = vsyncpa [#allocation5], 1

</llo_original>
